<compile_context>
chip_gen: v5e
topology: v5e:2x2
jax: 0.10.0
libtpu: 0.0.40
codegen_flags: <defaults>
</compile_context>

<pallas_src>
import functools

import jax
import jax.numpy as jnp
from jax.experimental import pallas as pl
from jax.experimental.pallas import tpu as pltpu

NUM_CLASSES = 10
_LOG_GAMMA_10 = 12.801827480081469     # lgamma(10) == log(9!) == log(362880)
_HALF_LOG_2PI = 0.9189385332046727     # 0.5 * log(2*pi)

_LANE = 128
_MAX_BLOCK_N = 32768                   # lane-dense batch tile: (10, 32768) f32


def _stirling_digamma_lgamma(z):
    """Asymptotic digamma(z) and lgamma(z), valid for z >= 9 (f32)."""
    inv = 1.0 / z
    inv2 = inv * inv
    log_z = jnp.log(z)
    digamma = (log_z - 0.5 * inv
               - inv2 * (1.0 / 12.0 - inv2 * (1.0 / 120.0 - inv2 * (1.0 / 252.0))))
    lgamma = ((z - 0.5) * log_z - z + _HALF_LOG_2PI
              + inv * (1.0 / 12.0 - inv2 * (1.0 / 360.0 - inv2 * (1.0 / 1260.0))))
    return digamma, lgamma


def _digamma_lgamma(x):
    """Fused elementwise digamma(x) and lgamma(x) for x >= 1 (float32).

    Recurrence-shift by 8 so the asymptotic series is evaluated at z = x+8 >= 9:
        digamma(x) = digamma(z) - sum_{i=0..7} 1/(x+i)
        lgamma(x)  = lgamma(z)  - log(prod_{i=0..7} (x+i))
    The 8 reciprocals fold into 2 rational terms (2 divides) and the 8 logs
    into 2 logs of 4-factor products (no f32 overflow for x up to ~4e9); the
    Stirling tail shares log(z), 1/z and 1/z^2 between both series.
    """
    x1 = x + 1.0
    x2 = x + 2.0
    x3 = x + 3.0
    x4 = x + 4.0
    x5 = x + 5.0
    x6 = x + 6.0
    x7 = x + 7.0

    d01 = x * x1
    d23 = x2 * x3
    d45 = x4 * x5
    d67 = x6 * x7
    two_x = x + x
    n01 = two_x + 1.0      # 1/x     + 1/(x+1) = n01 / d01
    n23 = two_x + 5.0      # 1/(x+2) + 1/(x+3) = n23 / d23
    n45 = two_x + 9.0
    n67 = two_x + 13.0

    d0123 = d01 * d23      # prod_{i=0..3} (x+i)
    d4567 = d45 * d67      # prod_{i=4..7} (x+i)
    n0123 = n01 * d23 + n23 * d01
    n4567 = n45 * d67 + n67 * d45

    dig_shift = -(n0123 / d0123 + n4567 / d4567)
    lg_shift = -(jnp.log(d0123) + jnp.log(d4567))

    dig, lg = _stirling_digamma_lgamma(x + 8.0)
    return dig + dig_shift, lg + lg_shift


def _loss_kernel(out_ref, lab_ref, sums_ref, acc_l1_ref, acc_l2_ref,
                 *, n_total, blocks_per_split):
    p = pl.program_id(0)   # megacore split ("parallel")
    i = pl.program_id(1)   # batch blocks within split ("arbitrary" reduction)

    @pl.when(i == 0)
    def _init():
        acc_l1_ref[...] = jnp.zeros_like(acc_l1_ref)
        acc_l2_ref[...] = jnp.zeros_like(acc_l2_ref)

    x = out_ref[...]       # (C, BN) f32, class-major / lane-dense
    lab = lab_ref[...]     # (1, BN) i32
    c, bn = x.shape

    # Columns >= n_total are wrapper padding (output=0, labels=0): every
    # transcendental below stays finite; their loss contribution is masked.
    col0 = (p * blocks_per_split + i) * bn
    col = jax.lax.broadcasted_iota(jnp.int32, (1, bn), 1) + col0
    validf = (col < n_total).astype(jnp.float32)              # (1, BN)

    # one_hot(labels, C): dense sublane-broadcast compare.
    class_ids = jax.lax.broadcasted_iota(jnp.int32, (c, bn), 0)
    labels = (class_ids == lab).astype(jnp.float32)           # (C, BN)

    evidence = x + 1.0
    S = jnp.sum(evidence, axis=0, keepdims=True)              # (1, BN)
    inv_S = pl.reciprocal(S, approx=True)                     # hoisted per-sample
    inv_St = pl.reciprocal(S + 1.0, approx=True)
    P = evidence * inv_S
    L1 = (labels - P) ** 2 + P * (1.0 - P) * inv_St           # (C, BN)

    a = labels + (1.0 - labels) * evidence                    # entries >= 1
    a_row = jnp.sum(a, axis=0, keepdims=True)                 # (1, BN), >= 10

    dg_a, lg_a = _digamma_lgamma(a)                           # shifted path, x >= 1
    dg_r, lg_r = _stirling_digamma_lgamma(a_row)              # shift-free, z >= 10

    L2_2 = jnp.sum((a - 1.0) * (dg_a - dg_r), axis=0, keepdims=True)
    # log-space normalizer: lgamma(sum a) - lgamma(10) - sum lgamma(a)
    L2_1 = lg_r - _LOG_GAMMA_10 - jnp.sum(lg_a, axis=0, keepdims=True)
    L2 = L2_1 + L2_2                                          # (1, BN)

    # Per-lane partial sums in VMEM (cheap VPU adds); the expensive cross-lane
    # reduce + SMEM store happens once per split in the finalize branch.
    acc_l1_ref[...] += jnp.sum(L1, axis=0, keepdims=True) * validf
    acc_l2_ref[...] += L2 * validf

    @pl.when(i == pl.num_programs(1) - 1)
    def _finalize():
        sums_ref[0, 0] = jnp.sum(acc_l1_ref[...])
        sums_ref[0, 1] = jnp.sum(acc_l2_ref[...])


@jax.jit
def my_custom_loss(output, labels, epoch):
    n, c = output.shape

    # Class-major, lane-dense layout: (C, N) puts the batch on the 128-wide
    # lane axis so the EUP-bound transcendental work runs at full occupancy.
    out_t = jnp.transpose(output).astype(jnp.float32)          # (C, N)
    lab_t = labels.reshape(1, n).astype(jnp.int32)             # (1, N)

    block_n = min(_MAX_BLOCK_N, pl.cdiv(n, _LANE) * _LANE)     # lane-aligned tile
    n_blocks = pl.cdiv(n, block_n)
    # v7x megacore split (2 TCs); on 1-TC chips the extra axis just runs serially.
    num_splits = 2 if n_blocks >= 2 else 1
    blocks_per_split = pl.cdiv(n_blocks, num_splits)
    n_pad = num_splits * blocks_per_split * block_n

    out_t = jnp.pad(out_t, ((0, 0), (0, n_pad - n)))
    lab_t = jnp.pad(lab_t, ((0, 0), (0, n_pad - n)))

    cost = pl.CostEstimate(flops=60 * n * c,
                           transcendentals=7 * n * c,
                           bytes_accessed=(4 * c + 4) * n)

    sums = pl.pallas_call(
        functools.partial(_loss_kernel, n_total=n,
                          blocks_per_split=blocks_per_split),
        out_shape=jax.ShapeDtypeStruct((num_splits, 2), jnp.float32),
        grid_spec=pltpu.PrefetchScalarGridSpec(
            num_scalar_prefetch=0,
            grid=(num_splits, blocks_per_split),
            in_specs=[
                pl.BlockSpec((c, block_n),
                             lambda p, i: (0, p * blocks_per_split + i)),
                pl.BlockSpec((1, block_n),
                             lambda p, i: (0, p * blocks_per_split + i)),
            ],
            out_specs=pl.BlockSpec((1, 2), lambda p, i: (p, 0),
                                   memory_space=pltpu.MemorySpace.SMEM),
            scratch_shapes=[pltpu.VMEM((1, block_n), jnp.float32),   # L1 partials
                            pltpu.VMEM((1, block_n), jnp.float32)],  # L2 partials
        ),
        compiler_params=pltpu.CompilerParams(
            dimension_semantics=("parallel", "arbitrary")),
        cost_estimate=cost,
    )(out_t, lab_t)

    total = jnp.sum(sums, axis=0)   # combine per-core partial sums
    # PyTorch broadcasts L2 (N,) against L1 (N, C) along the LAST axis (only
    # valid for N == C == 10); after the full-tensor sum this equals
    # sum(L1) + lamda * C * sum(L2).
    lamda = jnp.minimum(jnp.float32(1.0), jnp.asarray(epoch, jnp.float32) / 10.0)
    return total[0] + lamda * jnp.float32(c) * total[1]


def _reference_loss(output, labels, epoch):
    """Pure-JAX reference (mirrors the PyTorch forward)."""
    labels_1h = jax.nn.one_hot(labels, NUM_CLASSES, dtype=jnp.float32)
    evidence = output + 1.0
    S = evidence.sum(axis=1)
    S_temp = S + 1.0
    P = evidence / S[:, None]
    L1 = (labels_1h - P) ** 2 + P * (1.0 - P) / S_temp[:, None]
    a = labels_1h + (1.0 - labels_1h) * evidence
    a_addrow = a.sum(axis=1)
    L2_2 = ((a - 1.0) * (jax.scipy.special.digamma(a)
                         - jax.scipy.special.digamma(a_addrow)[:, None])).sum(axis=1)
    lg = jax.scipy.special.gammaln
    L2_1 = lg(a_addrow) - lg(jnp.float32(10.0)) - lg(a).sum(axis=1)
    L2 = L2_1 + L2_2
    lamda = jnp.minimum(1.0, epoch / 10.0)
    loss_temp = L1 + lamda * L2          # broadcast along last axis (N == C here)
    return jnp.sum(loss_temp)


if __name__ == "__main__":
    key = jax.random.PRNGKey(0)
    k1, k2 = jax.random.split(key)

    # N must equal 10 for the original PyTorch broadcast (L1 (N,10) + L2 (N,)) to be valid.
    N = 10
    output = jax.random.uniform(k1, (N, NUM_CLASSES), dtype=jnp.float32)
    labels = jax.random.randint(k2, (N,), 0, NUM_CLASSES, dtype=jnp.int32)
    epoch = jnp.float32(3.0)

    loss = my_custom_loss(output, labels, epoch)
    loss = jax.block_until_ready(loss)

    ref = _reference_loss(output, labels, epoch)
    assert jnp.allclose(loss, ref, rtol=1e-3, atol=1e-3), (loss, ref)
    print("KERNEL_OK")
</pallas_src>

<mosaic_0001>
module attributes {stable_mosaic.version = 11 : i64} {
  func.func @_loss_kernel(%arg0: i32, %arg1: i32, %arg2: memref<10x128xf32, #tpu.memory_space<vmem>>, %arg3: memref<1x128xi32, #tpu.memory_space<vmem>>, %arg4: memref<1x2xf32, #tpu.memory_space<smem>>, %arg5: memref<1x128xf32, #tpu.memory_space<vmem>>, %arg6: memref<1x128xf32, #tpu.memory_space<vmem>>) attributes {dimension_semantics = [#tpu.dimension_semantics<parallel>, #tpu.dimension_semantics<arbitrary>], iteration_bounds = array<i64: 1, 1>, scalar_prefetch = 0 : i64, scratch_operands = 2 : i64, tpu.core_type = #tpu.core_type<tc>, window_params = [{transform_indices = @transform_0, window_bounds = array<i64: 10, 128>}, {transform_indices = @transform_1, window_bounds = array<i64: 1, 128>}, {transform_indices = @transform_2, window_bounds = array<i64: 1, 2>}]} {
    %c0_i32 = arith.constant 0 : i32
    %0 = arith.cmpi eq, %arg1, %c0_i32 : i32
    %1 = arith.extui %0 : i1 to i32
    %c0_i32_0 = arith.constant 0 : i32
    %2 = arith.cmpi ne, %1, %c0_i32_0 : i32
    scf.if %2 {
      %cst_58 = arith.constant 0.000000e+00 : f32
      %181 = vector.broadcast %cst_58 : f32 to vector<1x128xf32>
      %c0_59 = arith.constant 0 : index
      %c0_60 = arith.constant 0 : index
      %182 = vector.load %arg5[%c0_59, %c0_60] : memref<1x128xf32, #tpu.memory_space<vmem>>, vector<1x128xf32>
      tpu.vector_store %arg5[%c0_59, %c0_60], %181 {strides = array<i32>} : memref<1x128xf32, #tpu.memory_space<vmem>>, vector<1x128xf32>,
      %cst_61 = arith.constant 0.000000e+00 : f32
      %183 = vector.broadcast %cst_61 : f32 to vector<1x128xf32>
      %c0_62 = arith.constant 0 : index
      %c0_63 = arith.constant 0 : index
      %184 = vector.load %arg6[%c0_62, %c0_63] : memref<1x128xf32, #tpu.memory_space<vmem>>, vector<1x128xf32>
      tpu.vector_store %arg6[%c0_62, %c0_63], %183 {strides = array<i32>} : memref<1x128xf32, #tpu.memory_space<vmem>>, vector<1x128xf32>,
    } else {
    }
    %c0 = arith.constant 0 : index
    %c0_1 = arith.constant 0 : index
    %3 = vector.load %arg2[%c0, %c0_1] : memref<10x128xf32, #tpu.memory_space<vmem>>, vector<10x128xf32>
    %c0_2 = arith.constant 0 : index
    %c0_3 = arith.constant 0 : index
    %4 = vector.load %arg3[%c0_2, %c0_3] : memref<1x128xi32, #tpu.memory_space<vmem>>, vector<1x128xi32>
    %c1_i32 = arith.constant 1 : i32
    %5 = arith.muli %arg0, %c1_i32 : i32
    %6 = arith.addi %5, %arg1 : i32
    %c128_i32 = arith.constant 128 : i32
    %7 = arith.muli %6, %c128_i32 : i32
    %8 = tpu.iota {dimensions = array<i32: 1>} : vector<1x128xi32>
    %9 = vector.broadcast %7 : i32 to vector<1x128xi32>
    %10 = arith.addi %8, %9 : vector<1x128xi32>
    %c10_i32 = arith.constant 10 : i32
    %11 = vector.broadcast %c10_i32 : i32 to vector<1x128xi32>
    %12 = arith.cmpi slt, %10, %11 : vector<1x128xi32>
    %13 = arith.extui %12 : vector<1x128xi1> to vector<1x128xi32>
    %14 = arith.sitofp %13 : vector<1x128xi32> to vector<1x128xf32>
    %15 = tpu.iota {dimensions = array<i32: 0>} : vector<10x128xi32>
    %16 = vector.broadcast %4 : vector<1x128xi32> to vector<10x128xi32>
    %17 = arith.cmpi eq, %15, %16 : vector<10x128xi32>
    %18 = arith.extui %17 : vector<10x128xi1> to vector<10x128xi32>
    %19 = arith.sitofp %18 : vector<10x128xi32> to vector<10x128xf32>
    %cst = arith.constant 1.000000e+00 : f32
    %20 = vector.broadcast %cst : f32 to vector<10x128xf32>
    %21 = arith.addf %3, %20 : vector<10x128xf32>
    %cst_4 = arith.constant dense<0.000000e+00> : vector<128xf32>
    %22 = vector.multi_reduction <add>, %21, %cst_4 [0] : vector<10x128xf32> to vector<128xf32>
    %23 = vector.shape_cast %22 : vector<128xf32> to vector<1x128xf32>
    %24 = tpu.reciprocal %23 {approx = true} : vector<1x128xf32> -> vector<1x128xf32>
    %cst_5 = arith.constant 1.000000e+00 : f32
    %25 = vector.broadcast %cst_5 : f32 to vector<1x128xf32>
    %26 = arith.addf %23, %25 : vector<1x128xf32>
    %27 = tpu.reciprocal %26 {approx = true} : vector<1x128xf32> -> vector<1x128xf32>
    %28 = vector.broadcast %24 : vector<1x128xf32> to vector<10x128xf32>
    %29 = arith.mulf %21, %28 : vector<10x128xf32>
    %30 = arith.subf %19, %29 : vector<10x128xf32>
    %31 = arith.mulf %30, %30 : vector<10x128xf32>
    %cst_6 = arith.constant 1.000000e+00 : f32
    %32 = vector.broadcast %cst_6 : f32 to vector<10x128xf32>
    %33 = arith.subf %32, %29 : vector<10x128xf32>
    %34 = arith.mulf %29, %33 : vector<10x128xf32>
    %35 = vector.broadcast %27 : vector<1x128xf32> to vector<10x128xf32>
    %36 = arith.mulf %34, %35 : vector<10x128xf32>
    %37 = arith.addf %31, %36 : vector<10x128xf32>
    %cst_7 = arith.constant 1.000000e+00 : f32
    %38 = vector.broadcast %cst_7 : f32 to vector<10x128xf32>
    %39 = arith.subf %38, %19 : vector<10x128xf32>
    %40 = arith.mulf %39, %21 : vector<10x128xf32>
    %41 = arith.addf %19, %40 : vector<10x128xf32>
    %cst_8 = arith.constant dense<0.000000e+00> : vector<128xf32>
    %42 = vector.multi_reduction <add>, %41, %cst_8 [0] : vector<10x128xf32> to vector<128xf32>
    %43 = vector.shape_cast %42 : vector<128xf32> to vector<1x128xf32>
    %cst_9 = arith.constant 1.000000e+00 : f32
    %44 = vector.broadcast %cst_9 : f32 to vector<10x128xf32>
    %45 = arith.addf %41, %44 : vector<10x128xf32>
    %cst_10 = arith.constant 2.000000e+00 : f32
    %46 = vector.broadcast %cst_10 : f32 to vector<10x128xf32>
    %47 = arith.addf %41, %46 : vector<10x128xf32>
    %cst_11 = arith.constant 3.000000e+00 : f32
    %48 = vector.broadcast %cst_11 : f32 to vector<10x128xf32>
    %49 = arith.addf %41, %48 : vector<10x128xf32>
    %cst_12 = arith.constant 4.000000e+00 : f32
    %50 = vector.broadcast %cst_12 : f32 to vector<10x128xf32>
    %51 = arith.addf %41, %50 : vector<10x128xf32>
    %cst_13 = arith.constant 5.000000e+00 : f32
    %52 = vector.broadcast %cst_13 : f32 to vector<10x128xf32>
    %53 = arith.addf %41, %52 : vector<10x128xf32>
    %cst_14 = arith.constant 6.000000e+00 : f32
    %54 = vector.broadcast %cst_14 : f32 to vector<10x128xf32>
    %55 = arith.addf %41, %54 : vector<10x128xf32>
    %cst_15 = arith.constant 7.000000e+00 : f32
    %56 = vector.broadcast %cst_15 : f32 to vector<10x128xf32>
    %57 = arith.addf %41, %56 : vector<10x128xf32>
    %58 = arith.mulf %41, %45 : vector<10x128xf32>
    %59 = arith.mulf %47, %49 : vector<10x128xf32>
    %60 = arith.mulf %51, %53 : vector<10x128xf32>
    %61 = arith.mulf %55, %57 : vector<10x128xf32>
    %62 = arith.addf %41, %41 : vector<10x128xf32>
    %cst_16 = arith.constant 1.000000e+00 : f32
    %63 = vector.broadcast %cst_16 : f32 to vector<10x128xf32>
    %64 = arith.addf %62, %63 : vector<10x128xf32>
    %cst_17 = arith.constant 5.000000e+00 : f32
    %65 = vector.broadcast %cst_17 : f32 to vector<10x128xf32>
    %66 = arith.addf %62, %65 : vector<10x128xf32>
    %cst_18 = arith.constant 9.000000e+00 : f32
    %67 = vector.broadcast %cst_18 : f32 to vector<10x128xf32>
    %68 = arith.addf %62, %67 : vector<10x128xf32>
    %cst_19 = arith.constant 1.300000e+01 : f32
    %69 = vector.broadcast %cst_19 : f32 to vector<10x128xf32>
    %70 = arith.addf %62, %69 : vector<10x128xf32>
    %71 = arith.mulf %58, %59 : vector<10x128xf32>
    %72 = arith.mulf %60, %61 : vector<10x128xf32>
    %73 = arith.mulf %64, %59 : vector<10x128xf32>
    %74 = arith.mulf %66, %58 : vector<10x128xf32>
    %75 = arith.addf %73, %74 : vector<10x128xf32>
    %76 = arith.mulf %68, %61 : vector<10x128xf32>
    %77 = arith.mulf %70, %60 : vector<10x128xf32>
    %78 = arith.addf %76, %77 : vector<10x128xf32>
    %79 = arith.divf %75, %71 : vector<10x128xf32>
    %80 = arith.divf %78, %72 : vector<10x128xf32>
    %81 = arith.addf %79, %80 : vector<10x128xf32>
    %cst_20 = arith.constant 0.000000e+00 : f32
    %82 = vector.broadcast %cst_20 : f32 to vector<10x128xf32>
    %83 = arith.subf %82, %81 : vector<10x128xf32>
    %84 = math.log %71 : vector<10x128xf32>
    %85 = math.log %72 : vector<10x128xf32>
    %86 = arith.addf %84, %85 : vector<10x128xf32>
    %cst_21 = arith.constant 0.000000e+00 : f32
    %87 = vector.broadcast %cst_21 : f32 to vector<10x128xf32>
    %88 = arith.subf %87, %86 : vector<10x128xf32>
    %cst_22 = arith.constant 8.000000e+00 : f32
    %89 = vector.broadcast %cst_22 : f32 to vector<10x128xf32>
    %90 = arith.addf %41, %89 : vector<10x128xf32>
    %cst_23 = arith.constant 1.000000e+00 : f32
    %91 = vector.broadcast %cst_23 : f32 to vector<10x128xf32>
    %92 = arith.divf %91, %90 : vector<10x128xf32>
    %93 = arith.mulf %92, %92 : vector<10x128xf32>
    %94 = math.log %90 : vector<10x128xf32>
    %cst_24 = arith.constant 5.000000e-01 : f32
    %95 = vector.broadcast %cst_24 : f32 to vector<10x128xf32>
    %96 = arith.mulf %95, %92 : vector<10x128xf32>
    %97 = arith.subf %94, %96 : vector<10x128xf32>
    %cst_25 = arith.constant 0.0039682542 : f32
    %98 = vector.broadcast %cst_25 : f32 to vector<10x128xf32>
    %99 = arith.mulf %93, %98 : vector<10x128xf32>
    %cst_26 = arith.constant 0.00833333377 : f32
    %100 = vector.broadcast %cst_26 : f32 to vector<10x128xf32>
    %101 = arith.subf %100, %99 : vector<10x128xf32>
    %102 = arith.mulf %93, %101 : vector<10x128xf32>
    %cst_27 = arith.constant 0.0833333358 : f32
    %103 = vector.broadcast %cst_27 : f32 to vector<10x128xf32>
    %104 = arith.subf %103, %102 : vector<10x128xf32>
    %105 = arith.mulf %93, %104 : vector<10x128xf32>
    %106 = arith.subf %97, %105 : vector<10x128xf32>
    %cst_28 = arith.constant 5.000000e-01 : f32
    %107 = vector.broadcast %cst_28 : f32 to vector<10x128xf32>
    %108 = arith.subf %90, %107 : vector<10x128xf32>
    %109 = arith.mulf %108, %94 : vector<10x128xf32>
    %110 = arith.subf %109, %90 : vector<10x128xf32>
    %cst_29 = arith.constant 0.918938517 : f32
    %111 = vector.broadcast %cst_29 : f32 to vector<10x128xf32>
    %112 = arith.addf %110, %111 : vector<10x128xf32>
    %cst_30 = arith.constant 7.93650805E-4 : f32
    %113 = vector.broadcast %cst_30 : f32 to vector<10x128xf32>
    %114 = arith.mulf %93, %113 : vector<10x128xf32>
    %cst_31 = arith.constant 0.00277777785 : f32
    %115 = vector.broadcast %cst_31 : f32 to vector<10x128xf32>
    %116 = arith.subf %115, %114 : vector<10x128xf32>
    %117 = arith.mulf %93, %116 : vector<10x128xf32>
    %cst_32 = arith.constant 0.0833333358 : f32
    %118 = vector.broadcast %cst_32 : f32 to vector<10x128xf32>
    %119 = arith.subf %118, %117 : vector<10x128xf32>
    %120 = arith.mulf %92, %119 : vector<10x128xf32>
    %121 = arith.addf %112, %120 : vector<10x128xf32>
    %122 = arith.addf %106, %83 : vector<10x128xf32>
    %123 = arith.addf %121, %88 : vector<10x128xf32>
    %cst_33 = arith.constant 1.000000e+00 : f32
    %124 = vector.broadcast %cst_33 : f32 to vector<1x128xf32>
    %125 = arith.divf %124, %43 : vector<1x128xf32>
    %126 = arith.mulf %125, %125 : vector<1x128xf32>
    %127 = math.log %43 : vector<1x128xf32>
    %cst_34 = arith.constant 5.000000e-01 : f32
    %128 = vector.broadcast %cst_34 : f32 to vector<1x128xf32>
    %129 = arith.mulf %128, %125 : vector<1x128xf32>
    %130 = arith.subf %127, %129 : vector<1x128xf32>
    %cst_35 = arith.constant 0.0039682542 : f32
    %131 = vector.broadcast %cst_35 : f32 to vector<1x128xf32>
    %132 = arith.mulf %126, %131 : vector<1x128xf32>
    %cst_36 = arith.constant 0.00833333377 : f32
    %133 = vector.broadcast %cst_36 : f32 to vector<1x128xf32>
    %134 = arith.subf %133, %132 : vector<1x128xf32>
    %135 = arith.mulf %126, %134 : vector<1x128xf32>
    %cst_37 = arith.constant 0.0833333358 : f32
    %136 = vector.broadcast %cst_37 : f32 to vector<1x128xf32>
    %137 = arith.subf %136, %135 : vector<1x128xf32>
    %138 = arith.mulf %126, %137 : vector<1x128xf32>
    %139 = arith.subf %130, %138 : vector<1x128xf32>
    %cst_38 = arith.constant 5.000000e-01 : f32
    %140 = vector.broadcast %cst_38 : f32 to vector<1x128xf32>
    %141 = arith.subf %43, %140 : vector<1x128xf32>
    %142 = arith.mulf %141, %127 : vector<1x128xf32>
    %143 = arith.subf %142, %43 : vector<1x128xf32>
    %cst_39 = arith.constant 0.918938517 : f32
    %144 = vector.broadcast %cst_39 : f32 to vector<1x128xf32>
    %145 = arith.addf %143, %144 : vector<1x128xf32>
    %cst_40 = arith.constant 7.93650805E-4 : f32
    %146 = vector.broadcast %cst_40 : f32 to vector<1x128xf32>
    %147 = arith.mulf %126, %146 : vector<1x128xf32>
    %cst_41 = arith.constant 0.00277777785 : f32
    %148 = vector.broadcast %cst_41 : f32 to vector<1x128xf32>
    %149 = arith.subf %148, %147 : vector<1x128xf32>
    %150 = arith.mulf %126, %149 : vector<1x128xf32>
    %cst_42 = arith.constant 0.0833333358 : f32
    %151 = vector.broadcast %cst_42 : f32 to vector<1x128xf32>
    %152 = arith.subf %151, %150 : vector<1x128xf32>
    %153 = arith.mulf %125, %152 : vector<1x128xf32>
    %154 = arith.addf %145, %153 : vector<1x128xf32>
    %cst_43 = arith.constant 1.000000e+00 : f32
    %155 = vector.broadcast %cst_43 : f32 to vector<10x128xf32>
    %156 = arith.subf %41, %155 : vector<10x128xf32>
    %157 = vector.broadcast %139 : vector<1x128xf32> to vector<10x128xf32>
    %158 = arith.subf %122, %157 : vector<10x128xf32>
    %159 = arith.mulf %156, %158 : vector<10x128xf32>
    %cst_44 = arith.constant dense<0.000000e+00> : vector<128xf32>
    %160 = vector.multi_reduction <add>, %159, %cst_44 [0] : vector<10x128xf32> to vector<128xf32>
    %161 = vector.shape_cast %160 : vector<128xf32> to vector<1x128xf32>
    %cst_45 = arith.constant 12.8018274 : f32
    %162 = vector.broadcast %cst_45 : f32 to vector<1x128xf32>
    %163 = arith.subf %154, %162 : vector<1x128xf32>
    %cst_46 = arith.constant dense<0.000000e+00> : vector<128xf32>
    %164 = vector.multi_reduction <add>, %123, %cst_46 [0] : vector<10x128xf32> to vector<128xf32>
    %165 = vector.shape_cast %164 : vector<128xf32> to vector<1x128xf32>
    %166 = arith.subf %163, %165 : vector<1x128xf32>
    %167 = arith.addf %166, %161 : vector<1x128xf32>
    %c0_47 = arith.constant 0 : index
    %c0_48 = arith.constant 0 : index
    %168 = vector.load %arg5[%c0_47, %c0_48] : memref<1x128xf32, #tpu.memory_space<vmem>>, vector<1x128xf32>
    %cst_49 = arith.constant dense<0.000000e+00> : vector<128xf32>
    %169 = vector.multi_reduction <add>, %37, %cst_49 [0] : vector<10x128xf32> to vector<128xf32>
    %170 = vector.shape_cast %169 : vector<128xf32> to vector<1x128xf32>
    %171 = arith.mulf %170, %14 : vector<1x128xf32>
    %172 = arith.addf %168, %171 : vector<1x128xf32>
    %c0_50 = arith.constant 0 : index
    %c0_51 = arith.constant 0 : index
    %173 = vector.load %arg5[%c0_50, %c0_51] : memref<1x128xf32, #tpu.memory_space<vmem>>, vector<1x128xf32>
    tpu.vector_store %arg5[%c0_50, %c0_51], %172 {strides = array<i32>} : memref<1x128xf32, #tpu.memory_space<vmem>>, vector<1x128xf32>,
    %c0_52 = arith.constant 0 : index
    %c0_53 = arith.constant 0 : index
    %174 = vector.load %arg6[%c0_52, %c0_53] : memref<1x128xf32, #tpu.memory_space<vmem>>, vector<1x128xf32>
    %175 = arith.mulf %167, %14 : vector<1x128xf32>
    %176 = arith.addf %174, %175 : vector<1x128xf32>
    %c0_54 = arith.constant 0 : index
    %c0_55 = arith.constant 0 : index
    %177 = vector.load %arg6[%c0_54, %c0_55] : memref<1x128xf32, #tpu.memory_space<vmem>>, vector<1x128xf32>
    tpu.vector_store %arg6[%c0_54, %c0_55], %176 {strides = array<i32>} : memref<1x128xf32, #tpu.memory_space<vmem>>, vector<1x128xf32>,
    %c0_i32_56 = arith.constant 0 : i32
    %178 = arith.cmpi eq, %arg1, %c0_i32_56 : i32
    %179 = arith.extui %178 : i1 to i32
    %c0_i32_57 = arith.constant 0 : i32
    %180 = arith.cmpi ne, %179, %c0_i32_57 : i32
    scf.if %180 {
      %c0_58 = arith.constant 0 : index
      %c0_59 = arith.constant 0 : index
      %181 = vector.load %arg5[%c0_58, %c0_59] : memref<1x128xf32, #tpu.memory_space<vmem>>, vector<1x128xf32>
      %182 = vector.shape_cast %181 : vector<1x128xf32> to vector<1x1x128xf32>
      %cst_60 = arith.constant dense<0.000000e+00> : vector<1xf32>
      %183 = vector.multi_reduction <add>, %182, %cst_60 [1, 2] : vector<1x1x128xf32> to vector<1xf32>
      %184 = vector.shape_cast %183 : vector<1xf32> to vector<1x1x1xf32>
      %185 = vector.extract %184[0, 0, 0] : f32 from vector<1x1x1xf32>
      %c0_61 = arith.constant 0 : index
      %c0_62 = arith.constant 0 : index
      %186 = memref.load %arg4[%c0_61, %c0_62] : memref<1x2xf32, #tpu.memory_space<smem>>
      memref.store %185, %arg4[%c0_61, %c0_62] : memref<1x2xf32, #tpu.memory_space<smem>>
      %c0_63 = arith.constant 0 : index
      %c0_64 = arith.constant 0 : index
      %187 = vector.load %arg6[%c0_63, %c0_64] : memref<1x128xf32, #tpu.memory_space<vmem>>, vector<1x128xf32>
      %188 = vector.shape_cast %187 : vector<1x128xf32> to vector<1x1x128xf32>
      %cst_65 = arith.constant dense<0.000000e+00> : vector<1xf32>
      %189 = vector.multi_reduction <add>, %188, %cst_65 [1, 2] : vector<1x1x128xf32> to vector<1xf32>
      %190 = vector.shape_cast %189 : vector<1xf32> to vector<1x1x1xf32>
      %191 = vector.extract %190[0, 0, 0] : f32 from vector<1x1x1xf32>
      %c0_66 = arith.constant 0 : index
      %c1 = arith.constant 1 : index
      %192 = memref.load %arg4[%c0_66, %c1] : memref<1x2xf32, #tpu.memory_space<smem>>
      memref.store %191, %arg4[%c0_66, %c1] : memref<1x2xf32, #tpu.memory_space<smem>>
    } else {
    }
    return
  }
  func.func @transform_0(%arg0: i32, %arg1: i32) -> (i32, i32) {
    %c1_i32 = arith.constant 1 : i32
    %0 = arith.muli %arg0, %c1_i32 : i32
    %1 = arith.addi %0, %arg1 : i32
    %c0_i32 = arith.constant 0 : i32
    %c0_i32_0 = arith.constant 0 : i32
    return %c0_i32, %1 : i32, i32
  }
  func.func @transform_1(%arg0: i32, %arg1: i32) -> (i32, i32) {
    %c1_i32 = arith.constant 1 : i32
    %0 = arith.muli %arg0, %c1_i32 : i32
    %1 = arith.addi %0, %arg1 : i32
    %c0_i32 = arith.constant 0 : i32
    %c0_i32_0 = arith.constant 0 : i32
    return %c0_i32, %1 : i32, i32
  }
  func.func @transform_2(%arg0: i32, %arg1: i32) -> (i32, i32) {
    %c0_i32 = arith.constant 0 : i32
    %c0_i32_0 = arith.constant 0 : i32
    return %arg0, %c0_i32 : i32, i32
  }
}

</mosaic_0001>

<llo_original>
// kernel: my_custom_loss.1
$region0: #{my_custom_loss.1}
  #allocation0 [shape = 'u32[]', space=smem, size = 0x4, offset = 0x4, fixed_abs, tag = 'smem constant byte address 0x4 - core index']
  #allocation1 [shape = 'u32[72,128]{1,0:T(1,128)}', space=vmem, size = 0x9000, scoped, tag = 'internal scratch']
  #allocation2 [shape = 'f32[1,128]{1,0:T(1,128)}', space=vmem, size = 0x200, scoped, tag = 'scratch operand']
  #allocation3 [shape = 'f32[1,128]{1,0:T(1,128)}', space=vmem, size = 0x200, scoped, tag = 'scratch operand']
  %s0 = inlined_call_operand.vmem [shape: f32[10,128], index: 0, kind: input, shape index: {}]
  %s1 = inlined_call_operand.vmem [shape: s32[1,128], index: 1, kind: input, shape index: {}]
  %s2 = inlined_call_operand.vmem [shape: f32[1,2], index: 2, kind: output, shape index: {}]
  %s3 = sld [smem:[#allocation0]]
  $region26: #{my_custom_loss.1} parent=0
    _
  %s5 = ssub.s32 1, %s3
  %s6 = scalar_select 0, %s5, %s3
  $region1: #{my_custom_loss.1} parent=0
    #allocation4 [shape = 'u8[512]{0}', space=smem, size = 0x200, scoped, tag = 'output window, operand 0, single buffered']
    #allocation5 [shape = 's32[1]{0}', space=sflag, size = 0x4, scoped, tag = 'scoped memory for my_custom_loss.1']
    %7 = vsyncpa [#allocation5], 0
    // Predicated region
    $region2: #{my_custom_loss.1} parent=1 // pred_check
      _
    $region3: #{my_custom_loss.1} parent=1 // pred_check_branch
      %9 = sbr.rel (0) target = $region5
    $region4: #{my_custom_loss.1} parent=1 // pred_region
      %s10 = sadd.s32 0, 0
      %p11 = scmp.lt.s32.totalorder %s10, 0
      %s12 = scalar_select %p11, %s10, 0
      %s13 = smul.addr %s12, 8
      %s14 = scalar_lea.vmem %s0, %s13
      %s15 = sadd.s32 0, 0
    $region5: #{my_custom_loss.1} parent=1 // pred_fallthru
      _
    // Predicated region
    $region6: #{my_custom_loss.1} parent=1 // pred_check
      _
    $region7: #{my_custom_loss.1} parent=1 // pred_check_branch
      %17 = sbr.rel (0) target = $region9
    $region8: #{my_custom_loss.1} parent=1 // pred_region
      %s18 = sadd.s32 0, 0
      %p19 = scmp.lt.s32.totalorder %s18, 0
      %s20 = scalar_select %p19, %s18, 0
      %s21 = scalar_lea.vmem %s1, %s20
      %s22 = sadd.s32 0, 0
    $region9: #{my_custom_loss.1} parent=1 // pred_fallthru
      _
    %s23 = sadd.s32 0, 0
    %p24 = scmp.lt.s32.totalorder %s23, 0
    %s25 = scalar_select %p24, %s23, 0
    %s26 = smul.addr %s25, 8
    %s27 = scalar_lea.vmem %s0, %s26
    %s28 = sadd.s32 0, 0
    %p29 = scmp.lt.s32.totalorder %s28, 0
    %s30 = scalar_select %p29, %s28, 0
    %s31 = scalar_lea.vmem %s1, %s30
    %s32 = sadd.s32 0, 0
    %p33 = scmp.lt.s32.totalorder %s32, 0
    %s34 = scalar_select %p33, %s32, 0
    %s35 = smul.addr %s34, 8
    %s36 = scalar_lea.vmem %s0, %s35
    %s37 = sadd.s32 0, 0
    %s38 = sadd.s32 0, 0
    %p39 = scmp.lt.s32.totalorder %s38, 0
    %s40 = scalar_select %p39, %s38, 0
    %s41 = scalar_lea.vmem %s1, %s40
    %s42 = sadd.s32 0, 0
    %p43 = scmp.eq.s32.totalorder 0, 0
    // Predicated region
    $region10: #{my_custom_loss.1} parent=1 // pred_check
      %p44 = pneg %p43
    $region11: #{my_custom_loss.1} parent=1 // pred_check_branch
      %46 = sbr.rel (%p44) target = $region13
    $region12: #{my_custom_loss.1} parent=1 // pred_region
      %47 = vst [vmem:[#allocation2] sm:$0x1] 0.0
      %48 = vst [vmem:[#allocation3] sm:$0x1] 0.0
    $region13: #{my_custom_loss.1} parent=1 // pred_fallthru
      _
    %v49 = vld [vmem:[%s36] sm:$0xff]
    %v50 = vld [vmem:[%s36 + $0x8] sm:$0x3]
    %v51 = vld [vmem:[%s41] sm:$0x1]
    %s52 = sadd.s32 0, 0
    %s53 = smul.u32 %s52, 128
    %v54 = vlaneseq
    %v55 = vand.u32 %v54, 127
    %v56 = vstv %s53
    %v57 = vadd.s32 %v55, %v56
    %vm58 = vcmp.lt.s32.totalorder %v57, 10
    %v59 = vsel %vm58, 1, 0
    %v60 = vcvt.s32.f32 %v59
    %v61 = vlaneseq
    %v62 = vshrl.u32 %v61, 7
    %v63 = vadd.s32 %v62, 8
    %v64 = vperm.slane %v51, 0
    %vm65 = vcmp.eq.s32.totalorder %v62, %v64
    %vm66 = vcmp.eq.s32.totalorder %v63, %v64
    %v67 = vsel %vm65, 1, 0
    %v68 = vsel %vm66, 1, 0
    %v69 = vcvt.s32.f32 %v67
    %v70 = vcvt.s32.f32 %v68
    %v71 = vadd.f32 %v49, 1.0
    %v72 = vadd.f32 %v50, 1.0
    %vm73 = vcmask 1041408
    %v74 = vsel %vm73, %v72, 0.0
    %v75 = vadd.f32 %v71, %v74
    %v76 = vrot.slane %v75, 4
    %v77 = vadd.f32 %v75, %v76
    %v78 = vrot.slane %v77, 2
    %v79 = vadd.f32 %v77, %v78
    %v80 = vrot.slane %v79, 1
    %v81 = vadd.f32 %v79, %v80
    %v82 = vrcp.pop %v81
    %v83 = vadd.f32 %v81, 1.0
    %v84 = vrcp.pop %v83
    %v85 = vmul.f32 %v71, %v82
    %v86 = vmul.f32 %v72, %v82
    %v87 = vsub.f32 %v69, %v85
    %v88 = vsub.f32 %v70, %v86
    %v89 = vmul.f32 %v87, %v87
    %v90 = vmul.f32 %v88, %v88
    %v91 = vsub.f32 1.0, %v85
    %v92 = vsub.f32 1.0, %v86
    %v93 = vmul.f32 %v85, %v91
    %v94 = vmul.f32 %v86, %v92
    %v95 = vmul.f32 %v93, %v84
    %v96 = vmul.f32 %v94, %v84
    %v97 = vadd.f32 %v89, %v95
    %v98 = vadd.f32 %v90, %v96
    %v99 = vsub.f32 1.0, %v69
    %v100 = vsub.f32 1.0, %v70
    %v101 = vmul.f32 %v99, %v71
    %v102 = vmul.f32 %v100, %v72
    %v103 = vadd.f32 %v69, %v101
    %v104 = vadd.f32 %v70, %v102
    %v105 = vsel %vm73, %v104, 0.0
    %v106 = vadd.f32 %v103, %v105
    %v107 = vrot.slane %v106, 4
    %v108 = vadd.f32 %v106, %v107
    %v109 = vrot.slane %v108, 2
    %v110 = vadd.f32 %v108, %v109
    %v111 = vrot.slane %v110, 1
    %v112 = vadd.f32 %v110, %v111
    %v113 = vadd.f32 %v103, 1.0
    %v114 = vadd.f32 %v104, 1.0
    %v115 = vadd.f32 %v103, 2.0
    %v116 = vadd.f32 %v104, 2.0
    %v117 = vadd.f32 %v103, 3.0
    %v118 = vadd.f32 %v104, 3.0
    %v119 = vadd.f32 %v103, 4.0
    %v120 = vadd.f32 %v104, 4.0
    %v121 = vadd.f32 %v103, 5.0
    %v122 = vadd.f32 %v104, 5.0
    %v123 = vadd.f32 %v103, 6.0
    %v124 = vadd.f32 %v104, 6.0
    %v125 = vadd.f32 %v103, 7.0
    %v126 = vadd.f32 %v104, 7.0
    %v127 = vmul.f32 %v103, %v113
    %v128 = vmul.f32 %v104, %v114
    %v129 = vmul.f32 %v115, %v117
    %v130 = vmul.f32 %v116, %v118
    %v131 = vmul.f32 %v119, %v121
    %v132 = vmul.f32 %v120, %v122
    %v133 = vmul.f32 %v123, %v125
    %v134 = vmul.f32 %v124, %v126
    %v135 = vadd.f32 %v103, %v103
    %v136 = vadd.f32 %v104, %v104
    %v137 = vadd.f32 %v135, 1.0
    %v138 = vadd.f32 %v136, 1.0
    %v139 = vadd.f32 %v135, 5.0
    %v140 = vadd.f32 %v136, 5.0
    %v141 = vadd.f32 %v135, 9.0
    %v142 = vadd.f32 %v136, 9.0
    %v143 = vadd.f32 %v135, 13.0
    %v144 = vadd.f32 %v136, 13.0
    %v145 = vmul.f32 %v127, %v129
    %v146 = vmul.f32 %v128, %v130
    %v147 = vmul.f32 %v131, %v133
    %v148 = vmul.f32 %v132, %v134
    %v149 = vmul.f32 %v137, %v129
    %v150 = vmul.f32 %v138, %v130
    %v151 = vmul.f32 %v139, %v127
    %v152 = vmul.f32 %v140, %v128
    %v153 = vadd.f32 %v149, %v151
    %v154 = vadd.f32 %v150, %v152
    %v155 = vmul.f32 %v141, %v133
    %v156 = vmul.f32 %v142, %v134
    %v157 = vmul.f32 %v143, %v131
    %v158 = vmul.f32 %v144, %v132
    %v159 = vadd.f32 %v155, %v157
    %v160 = vadd.f32 %v156, %v158
    %v161 = vrcp.pop %v145
    %v162 = vmul.f32 %v145, %v161
    %v163 = vsub.f32 1.0, %v162
    %v164 = vmul.f32 %v161, %v163
    %v165 = vadd.f32 %v161, %v164
    %vm166 = vweird.f32 %v145
    %vm167 = vweird.f32 %v161
    %vm168 = vmor %vm166, %vm167
    %v169 = vsel %vm168, %v161, %v165
    %v170 = vand.u32 2147483647, %v145
    %vm171 = vcmp.eq.f32.partialorder %v170, 8.507059e+37
    %v172 = vand.u32 %v145, 2147483648
    %v173 = vor.u32 1.1754944e-38, %v172
    %v174 = vsel %vm171, %v173, %v169
    %v175 = vmul.f32 %v153, %v174
    %v176 = vrcp.pop %v146
    %v177 = vmul.f32 %v146, %v176
    %v178 = vsub.f32 1.0, %v177
    %v179 = vmul.f32 %v176, %v178
    %v180 = vadd.f32 %v176, %v179
    %vm181 = vweird.f32 %v146
    %vm182 = vweird.f32 %v176
    %vm183 = vmor %vm181, %vm182
    %v184 = vsel %vm183, %v176, %v180
    %v185 = vand.u32 2147483647, %v146
    %vm186 = vcmp.eq.f32.partialorder %v185, 8.507059e+37
    %v187 = vand.u32 %v146, 2147483648
    %v188 = vor.u32 1.1754944e-38, %v187
    %v189 = vsel %vm186, %v188, %v184
    %v190 = vmul.f32 %v154, %v189
    %v191 = vrcp.pop %v147
    %v192 = vmul.f32 %v147, %v191
    %v193 = vsub.f32 1.0, %v192
    %v194 = vmul.f32 %v191, %v193
    %v195 = vadd.f32 %v191, %v194
    %vm196 = vweird.f32 %v147
    %vm197 = vweird.f32 %v191
    %vm198 = vmor %vm196, %vm197
    %v199 = vsel %vm198, %v191, %v195
    %v200 = vand.u32 2147483647, %v147
    %vm201 = vcmp.eq.f32.partialorder %v200, 8.507059e+37
    %v202 = vand.u32 %v147, 2147483648
    %v203 = vor.u32 1.1754944e-38, %v202
    %v204 = vsel %vm201, %v203, %v199
    %v205 = vmul.f32 %v159, %v204
    %v206 = vrcp.pop %v148
    %v207 = vmul.f32 %v148, %v206
    %v208 = vsub.f32 1.0, %v207
    %v209 = vmul.f32 %v206, %v208
    %v210 = vadd.f32 %v206, %v209
    %vm211 = vweird.f32 %v148
    %vm212 = vweird.f32 %v206
    %vm213 = vmor %vm211, %vm212
    %v214 = vsel %vm213, %v206, %v210
    %v215 = vand.u32 2147483647, %v148
    %vm216 = vcmp.eq.f32.partialorder %v215, 8.507059e+37
    %v217 = vand.u32 %v148, 2147483648
    %v218 = vor.u32 1.1754944e-38, %v217
    %v219 = vsel %vm216, %v218, %v214
    %v220 = vmul.f32 %v160, %v219
    %v221 = vadd.f32 %v175, %v205
    %v222 = vadd.f32 %v190, %v220
    %v223 = vsub.f32 0.0, %v221
    %v224 = vsub.f32 0.0, %v222
    %v225 = vlog2.pop %v145
    %v226 = vmul.f32 %v225, 0.6931472
    %v227 = vlog2.pop %v146
    %v228 = vmul.f32 %v227, 0.6931472
    %v229 = vlog2.pop %v147
    %v230 = vmul.f32 %v229, 0.6931472
    %v231 = vlog2.pop %v148
    %v232 = vmul.f32 %v231, 0.6931472
    %v233 = vadd.f32 %v226, %v230
    %v234 = vadd.f32 %v228, %v232
    %v235 = vsub.f32 0.0, %v233
    %v236 = vsub.f32 0.0, %v234
    %v237 = vadd.f32 %v103, 8.0
    %v238 = vadd.f32 %v104, 8.0
    %v239 = vrcp.pop %v237
    %v240 = vmul.f32 %v237, %v239
    %v241 = vsub.f32 1.0, %v240
    %v242 = vmul.f32 %v239, %v241
    %v243 = vadd.f32 %v239, %v242
    %vm244 = vweird.f32 %v237
    %vm245 = vweird.f32 %v239
    %vm246 = vmor %vm244, %vm245
    %v247 = vsel %vm246, %v239, %v243
    %v248 = vand.u32 2147483647, %v237
    %vm249 = vcmp.eq.f32.partialorder %v248, 8.507059e+37
    %v250 = vand.u32 %v237, 2147483648
    %v251 = vor.u32 1.1754944e-38, %v250
    %v252 = vsel %vm249, %v251, %v247
    %v253 = vmul.f32 1.0, %v252
    %v254 = vrcp.pop %v238
    %v255 = vmul.f32 %v238, %v254
    %v256 = vsub.f32 1.0, %v255
    %v257 = vmul.f32 %v254, %v256
    %v258 = vadd.f32 %v254, %v257
    %vm259 = vweird.f32 %v238
    %vm260 = vweird.f32 %v254
    %vm261 = vmor %vm259, %vm260
    %v262 = vsel %vm261, %v254, %v258
    %v263 = vand.u32 2147483647, %v238
    %vm264 = vcmp.eq.f32.partialorder %v263, 8.507059e+37
    %v265 = vand.u32 %v238, 2147483648
    %v266 = vor.u32 1.1754944e-38, %v265
    %v267 = vsel %vm264, %v266, %v262
    %v268 = vmul.f32 1.0, %v267
    %v269 = vmul.f32 %v253, %v253
    %v270 = vmul.f32 %v268, %v268
    %v271 = vlog2.pop %v237
    %v272 = vmul.f32 %v271, 0.6931472
    %v273 = vlog2.pop %v238
    %v274 = vmul.f32 %v273, 0.6931472
    %v275 = vmul.f32 %v253, 0.5
    %v276 = vmul.f32 %v268, 0.5
    %v277 = vsub.f32 %v272, %v275
    %v278 = vsub.f32 %v274, %v276
    %v279 = vmul.f32 %v269, 0.003968254
    %v280 = vmul.f32 %v270, 0.003968254
    %v281 = vsub.f32 0.008333334, %v279
    %v282 = vsub.f32 0.008333334, %v280
    %v283 = vmul.f32 %v269, %v281
    %v284 = vmul.f32 %v270, %v282
    %v285 = vsub.f32 0.083333336, %v283
    %v286 = vsub.f32 0.083333336, %v284
    %v287 = vmul.f32 %v269, %v285
    %v288 = vmul.f32 %v270, %v286
    %v289 = vsub.f32 %v277, %v287
    %v290 = vsub.f32 %v278, %v288
    %v291 = vsub.f32 %v237, 0.5
    %v292 = vsub.f32 %v238, 0.5
    %v293 = vmul.f32 %v291, %v272
    %v294 = vmul.f32 %v292, %v274
    %v295 = vsub.f32 %v293, %v237
    %v296 = vsub.f32 %v294, %v238
    %v297 = vadd.f32 %v295, 0.9189385
    %v298 = vadd.f32 %v296, 0.9189385
    %v299 = vmul.f32 %v269, 0.0007936508
    %v300 = vmul.f32 %v270, 0.0007936508
    %v301 = vsub.f32 0.0027777778, %v299
    %v302 = vsub.f32 0.0027777778, %v300
    %v303 = vmul.f32 %v269, %v301
    %v304 = vmul.f32 %v270, %v302
    %v305 = vsub.f32 0.083333336, %v303
    %v306 = vsub.f32 0.083333336, %v304
    %v307 = vmul.f32 %v253, %v305
    %v308 = vmul.f32 %v268, %v306
    %v309 = vadd.f32 %v297, %v307
    %v310 = vadd.f32 %v298, %v308
    %v311 = vadd.f32 %v289, %v223
    %v312 = vadd.f32 %v290, %v224
    %v313 = vadd.f32 %v309, %v235
    %v314 = vadd.f32 %v310, %v236
    %v315 = vrcp.pop %v112
    %v316 = vmul.f32 %v112, %v315
    %v317 = vsub.f32 1.0, %v316
    %v318 = vmul.f32 %v315, %v317
    %v319 = vadd.f32 %v315, %v318
    %vm320 = vweird.f32 %v112
    %vm321 = vweird.f32 %v315
    %vm322 = vmor %vm320, %vm321
    %v323 = vsel %vm322, %v315, %v319
    %v324 = vand.u32 2147483647, %v112
    %vm325 = vcmp.eq.f32.partialorder %v324, 8.507059e+37
    %v326 = vand.u32 %v112, 2147483648
    %v327 = vor.u32 1.1754944e-38, %v326
    %v328 = vsel %vm325, %v327, %v323
    %v329 = vmul.f32 1.0, %v328
    %v330 = vmul.f32 %v329, %v329
    %v331 = vlog2.pop %v112
    %v332 = vmul.f32 %v331, 0.6931472
    %v333 = vmul.f32 %v329, 0.5
    %v334 = vsub.f32 %v332, %v333
    %v335 = vmul.f32 %v330, 0.003968254
    %v336 = vsub.f32 0.008333334, %v335
    %v337 = vmul.f32 %v330, %v336
    %v338 = vsub.f32 0.083333336, %v337
    %v339 = vmul.f32 %v330, %v338
    %v340 = vsub.f32 %v334, %v339
    %v341 = vsub.f32 %v112, 0.5
    %v342 = vmul.f32 %v341, %v332
    %v343 = vsub.f32 %v342, %v112
    %v344 = vadd.f32 %v343, 0.9189385
    %v345 = vmul.f32 %v330, 0.0007936508
    %v346 = vsub.f32 0.0027777778, %v345
    %v347 = vmul.f32 %v330, %v346
    %v348 = vsub.f32 0.083333336, %v347
    %v349 = vmul.f32 %v329, %v348
    %v350 = vadd.f32 %v344, %v349
    %v351 = vsub.f32 %v103, 1.0
    %v352 = vsub.f32 %v104, 1.0
    %v353 = vsub.f32 %v311, %v340
    %v354 = vsub.f32 %v312, %v340
    %v355 = vmul.f32 %v351, %v353
    %v356 = vmul.f32 %v352, %v354
    %v357 = vsel %vm73, %v356, 0.0
    %v358 = vadd.f32 %v355, %v357
    %v359 = vrot.slane %v358, 4
    %v360 = vadd.f32 %v358, %v359
    %v361 = vrot.slane %v360, 2
    %v362 = vadd.f32 %v360, %v361
    %v363 = vrot.slane %v362, 1
    %v364 = vadd.f32 %v362, %v363
    %v365 = vsub.f32 %v350, 12.801827
    %v366 = vsel %vm73, %v314, 0.0
    %v367 = vadd.f32 %v313, %v366
    %v368 = vrot.slane %v367, 4
    %v369 = vadd.f32 %v367, %v368
    %v370 = vrot.slane %v369, 2
    %v371 = vadd.f32 %v369, %v370
    %v372 = vrot.slane %v371, 1
    %v373 = vadd.f32 %v371, %v372
    %v374 = vsub.f32 %v365, %v373
    %v375 = vadd.f32 %v374, %v364
    %v376 = vld [vmem:[#allocation2] sm:$0x1]
    %v377 = vsel %vm73, %v98, 0.0
    %v378 = vadd.f32 %v97, %v377
    %v379 = vrot.slane %v378, 4
    %v380 = vadd.f32 %v378, %v379
    %v381 = vrot.slane %v380, 2
    %v382 = vadd.f32 %v380, %v381
    %v383 = vrot.slane %v382, 1
    %v384 = vadd.f32 %v382, %v383
    %v385 = vmul.f32 %v384, %v60
    %v386 = vadd.f32 %v376, %v385
    %387 = vst [vmem:[#allocation2] sm:$0x1] %v386
    %v388 = vld [vmem:[#allocation3] sm:$0x1]
    %v389 = vmul.f32 %v375, %v60
    %v390 = vadd.f32 %v388, %v389
    %391 = vst [vmem:[#allocation3] sm:$0x1] %v390
    // Predicated region
    $region14: #{my_custom_loss.1} parent=1 // pred_check
      %p392 = pneg %p43
    $region15: #{my_custom_loss.1} parent=1 // pred_check_branch
      %394 = sbr.rel (%p392) target = $region17
    $region16: #{my_custom_loss.1} parent=1 // pred_region
      %v395 = vld [vmem:[#allocation2] sm:$0x1]
      %vm396 = vcmask 1040384
      %v397 = vsel %vm396, %v395, 0.0
      %398 = vadd.xlane.f32.xlu0 %v397
      %v399 = vpop.xlane.xlu0 %398
      %v400 = vrot.slane %v399, 4
      %v401 = vadd.f32 %v399, %v400
      %v402 = vrot.slane %v401, 2
      %v403 = vadd.f32 %v401, %v402
      %v404 = vrot.slane %v403, 1
      %v405 = vadd.f32 %v403, %v404
      %s406 = vtos %v405
      %s407 = scalar_lea.smem [#allocation4], 0
      %408 = sst [smem:[%s407]] %s406
      %v409 = vld [vmem:[#allocation3] sm:$0x1]
      %v410 = vsel %vm396, %v409, 0.0
      %411 = vadd.xlane.f32.xlu0 %v410
      %v412 = vpop.xlane.xlu0 %411
      %v413 = vrot.slane %v412, 4
      %v414 = vadd.f32 %v412, %v413
      %v415 = vrot.slane %v414, 2
      %v416 = vadd.f32 %v414, %v415
      %v417 = vrot.slane %v416, 1
      %v418 = vadd.f32 %v416, %v417
      %s419 = vtos %v418
      %s420 = scalar_lea.smem [#allocation4], 1
      %421 = sst [smem:[%s420]] %s419
    $region17: #{my_custom_loss.1} parent=1 // pred_fallthru
      _
    // Predicated region
    $region18: #{my_custom_loss.1} parent=1 // pred_check
      _
    $region19: #{my_custom_loss.1} parent=1 // pred_check_branch
      %423 = sbr.rel (0) target = $region21
    $region20: #{my_custom_loss.1} parent=1 // pred_region
      %425 = vsyncadd [#allocation5], 0
      %s427 = sshll.u32 %s2, 4
      %s428 = int_to_ptr.vmem [resolvable:$true] %s427
      %430 = dma.smem_to_vmem [#allocation4], 16, %s428, [#allocation5]
    $region21: #{my_custom_loss.1} parent=1 // pred_fallthru
      _
    // Predicated region
    $region22: #{my_custom_loss.1} parent=1 // pred_check
      _
    $region23: #{my_custom_loss.1} parent=1 // pred_check_branch
      %432 = sbr.rel (0) target = $region25
    $region24: #{my_custom_loss.1} parent=1 // pred_region
      %434 = dma.done [#allocation5], 16
    $region25: #{my_custom_loss.1} parent=1 // pred_fallthru
      _
    %435 = sfence
    %436 = vsyncpa [#allocation5], 1

</llo_original>
